<compile_context>
chip_gen: v7x
topology: tpu7x:2x2x1
jax: 0.10.0
libtpu: 0.0.40
codegen_flags: <defaults>
</compile_context>

<pallas_src>
import functools

import jax
import jax.numpy as jnp
from jax.experimental import pallas as pl
from jax.experimental.pallas import tpu as pltpu


def _round_up(x, m):
    return (x + m - 1) // m * m


def _vmem_cap_bytes():
    """Per-core VMEM capacity, with a conservative fallback (v7x: 64 MiB/TC)."""
    try:
        cap = int(pltpu.get_tpu_info().vmem_capacity_bytes)
        if cap > 0:
            return cap
    except Exception:
        pass
    return 64 << 20


def _mlp_kernel(tanh_dtype, x_ref,
                w1_ref, b1_ref, w2_ref, b2_ref, w3_ref, b3_ref, w4_ref, b4_ref,
                o_ref):
    cdt = w1_ref.dtype  # matmul input dtype (bf16 by default)
    h = x_ref[...].astype(cdt)

    def hidden(h, w_ref, b_ref):
        acc = jnp.dot(h, w_ref[...], preferred_element_type=jnp.float32) + b_ref[...]
        # f32 tanh by default (v5e-safe); bf16 tanh (EUP saver on v6e/v7x)
        # when tanh_dtype == bf16.
        return jnp.tanh(acc.astype(tanh_dtype)).astype(cdt)

    h = hidden(h, w1_ref, b1_ref)
    h = hidden(h, w2_ref, b2_ref)
    h = hidden(h, w3_ref, b3_ref)
    out = jnp.dot(h, w4_ref[...], preferred_element_type=jnp.float32) + b4_ref[...]
    o_ref[...] = out.astype(o_ref.dtype)


def prepare_mlp_params(params, compute_dtype=jnp.bfloat16):
    """One-time weight prep: cast to compute dtype and zero-pad the hidden
    dims to 128-lane multiples.  W1's rows (d_in) and W4's cols (out_dim)
    keep their true sizes.  Call once and reuse; padding/casting weights per
    forward call costs a full HBM pass over the parameters."""
    (w1, b1), (w2, b2), (w3, b3), (w4, b4) = params
    cdt = jnp.dtype(compute_dtype)
    h1, h2, h3 = w1.shape[1], w2.shape[1], w3.shape[1]
    p1, p2, p3 = (_round_up(d, 128) for d in (h1, h2, h3))
    out_dim = w4.shape[1]

    def pad_w(w, rows, cols):
        w = w.astype(cdt)
        return jnp.pad(w, ((0, rows - w.shape[0]), (0, cols - w.shape[1])))

    def pad_b(b, cols):
        b = b.astype(jnp.float32).reshape(1, -1)
        return jnp.pad(b, ((0, 0), (0, cols - b.shape[1])))

    ws = (pad_w(w1, w1.shape[0], p1),
          pad_w(w2, p1, p2),
          pad_w(w3, p2, p3),
          pad_w(w4, p3, out_dim))
    bs = (pad_b(b1, p1), pad_b(b2, p2), pad_b(b3, p3), pad_b(b4, out_dim))
    return ws, bs


@functools.partial(jax.jit, static_argnames=("tile_b", "tanh_dtype"))
def mlp_forward(x, prepared, tile_b=None, tanh_dtype=jnp.float32):
    """x: [B, input_dim] float32.  prepared: output of prepare_mlp_params."""
    ws, bs = prepared
    w1, w2, w3, w4 = ws
    b1, b2, b3, b4 = bs
    B, d_in = x.shape
    assert w1.shape[0] == d_in, "input_dim mismatch with prepared params"
    out_dim = w4.shape[1]
    p1, p2, p3 = w1.shape[1], w2.shape[1], w3.shape[1]

    w_bytes = sum(int(w.size) * w.dtype.itemsize for w in ws)
    b_bytes = sum(int(b.size) * 4 for b in bs)

    cap = _vmem_cap_bytes()
    budget = int(cap * 0.75)  # headroom for compiler-internal scratch
    # TODO(synk): if w_bytes approaches the per-core budget (large hidden
    # sizes on v7x's 64 MiB VMEM), stream the large middle weights over an
    # added "arbitrary" grid axis instead of keeping all four layers resident.

    # Per-batch-row VMEM cost: double-buffered x/out tiles + ~2 live f32
    # activation tiles at the widest hidden width.
    per_row = (2 * d_in * x.dtype.itemsize
               + 2 * out_dim * 4
               + 2 * max(p1, p2, p3) * 4)
    rows_fit = max(8, (budget - w_bytes - b_bytes) // max(per_row, 1))

    if tile_b is None:
        tile_cap = int(min(1024, rows_fit))
        tile_cap = max(8, tile_cap - tile_cap % 8)
        n_tiles = pl.cdiv(B, tile_cap)
        if B >= 32:               # v7x: keep both TensorCores busy
            n_tiles = max(n_tiles, 2)
        tile_b = _round_up(pl.cdiv(B, n_tiles), 8)
    tile_b = max(8, _round_up(int(tile_b), 8))
    padded_B = _round_up(B, tile_b)

    xp = x if padded_B == B else jnp.pad(x, ((0, padded_B - B), (0, 0)))

    vmem_limit = w_bytes + b_bytes + tile_b * per_row + (2 << 20)
    vmem_limit = int(min(max(vmem_limit, 8 << 20), budget))

    # Constant-index-map blocks: single-buffered (DMA'd once, not per step).
    def const_spec(shape):
        return pl.BlockSpec(shape, lambda i: (0, 0), pipeline_mode=pl.Buffered(1))

    in_specs = [pl.BlockSpec((tile_b, d_in), lambda i: (i, 0))]
    for w, b in zip(ws, bs):
        in_specs.append(const_spec(w.shape))
        in_specs.append(const_spec(b.shape))

    kernel = functools.partial(_mlp_kernel, jnp.dtype(tanh_dtype))
    out = pl.pallas_call(
        kernel,
        out_shape=jax.ShapeDtypeStruct((padded_B, out_dim), jnp.float32),
        grid_spec=pltpu.PrefetchScalarGridSpec(
            num_scalar_prefetch=0,
            grid=(padded_B // tile_b,),
            in_specs=in_specs,
            out_specs=pl.BlockSpec((tile_b, out_dim), lambda i: (i, 0)),
        ),
        compiler_params=pltpu.CompilerParams(
            dimension_semantics=("parallel",),
            vmem_limit_bytes=vmem_limit,
        ),
    )(xp, w1, b1, w2, b2, w3, b3, w4, b4)

    return out if padded_B == B else out[:B]


def init_mlp_params(key, input_dim, hidden_size, output_dim):
    """Mimics nn.Linear U(-1/sqrt(fan_in), 1/sqrt(fan_in)) init.

    Weights are stored as [in, out] (transpose of PyTorch's [out, in])."""
    dims = [input_dim, hidden_size // 2, hidden_size, hidden_size // 2, output_dim]
    params = []
    for idx in range(4):
        fan_in, fan_out = dims[idx], dims[idx + 1]
        key, wk, bk = jax.random.split(key, 3)
        bound = 1.0 / jnp.sqrt(fan_in)
        w = jax.random.uniform(wk, (fan_in, fan_out), jnp.float32, -bound, bound)
        b = jax.random.uniform(bk, (fan_out,), jnp.float32, -bound, bound)
        params.append((w, b))
    return params


def mlp_reference(x, params, matmul_dtype=jnp.float32, tanh_dtype=jnp.float32):
    """Reference MLP; matmul inputs in matmul_dtype, f32 accumulation."""
    h = x.astype(matmul_dtype)
    out = None
    for i, (w, b) in enumerate(params):
        acc = jnp.dot(h, w.astype(matmul_dtype),
                      preferred_element_type=jnp.float32) + b.astype(jnp.float32)
        if i < 3:
            h = jnp.tanh(acc.astype(tanh_dtype)).astype(matmul_dtype)
        else:
            out = acc
    return out.astype(jnp.float32)


if __name__ == "__main__":
    key = jax.random.PRNGKey(0)
    input_dim, hidden_size, output_dim = 16, 32, 8
    batch = 8

    key, pkey, xkey = jax.random.split(key, 3)
    params = init_mlp_params(pkey, input_dim, hidden_size, output_dim)
    x = jax.random.normal(xkey, (batch, input_dim), jnp.float32)

    # One-time weight pad/cast (outside the per-step forward).
    prepared = jax.tree_util.tree_map(jax.block_until_ready,
                                      prepare_mlp_params(params))

    out = jax.block_until_ready(mlp_forward(x, prepared))
    assert out.shape == (batch, output_dim)

    # Exactness vs. a reference with the same bf16-matmul / f32-tanh path.
    ref_same = mlp_reference(x, params, matmul_dtype=jnp.bfloat16)
    assert jnp.allclose(out, ref_same, atol=1e-3, rtol=1e-3), \
        "mismatch vs matched-precision reference"

    # Sanity vs. the full-f32 semantics of the original nn.Module
    # (tolerance accounts for bf16 matmul inputs).
    ref_f32 = mlp_reference(x, params)
    assert jnp.allclose(out, ref_f32, atol=5e-2, rtol=5e-2), \
        "mismatch vs f32 reference"

    print("KERNEL_OK")
</pallas_src>

<mosaic_0001>
module attributes {stable_mosaic.version = 11 : i64} {
  func.func @_mlp_kernel(%arg0: i32, %arg1: memref<8x16xf32, #tpu.memory_space<vmem>>, %arg2: memref<16x128xbf16, #tpu.memory_space<vmem>>, %arg3: memref<1x128xf32, #tpu.memory_space<vmem>>, %arg4: memref<128x128xbf16, #tpu.memory_space<vmem>>, %arg5: memref<1x128xf32, #tpu.memory_space<vmem>>, %arg6: memref<128x128xbf16, #tpu.memory_space<vmem>>, %arg7: memref<1x128xf32, #tpu.memory_space<vmem>>, %arg8: memref<128x8xbf16, #tpu.memory_space<vmem>>, %arg9: memref<1x8xf32, #tpu.memory_space<vmem>>, %arg10: memref<8x8xf32, #tpu.memory_space<vmem>>) attributes {dimension_semantics = [#tpu.dimension_semantics<parallel>], iteration_bounds = array<i64: 1>, scalar_prefetch = 0 : i64, scratch_operands = 0 : i64, tpu.core_type = #tpu.core_type<tc>, window_params = [{transform_indices = @transform_0, window_bounds = array<i64: 8, 16>}, {pipeline_mode = #tpu.pipeline_mode<synchronous>, transform_indices = @transform_1, window_bounds = array<i64: 16, 128>}, {pipeline_mode = #tpu.pipeline_mode<synchronous>, transform_indices = @transform_2, window_bounds = array<i64: 1, 128>}, {pipeline_mode = #tpu.pipeline_mode<synchronous>, transform_indices = @transform_3, window_bounds = array<i64: 128, 128>}, {pipeline_mode = #tpu.pipeline_mode<synchronous>, transform_indices = @transform_4, window_bounds = array<i64: 1, 128>}, {pipeline_mode = #tpu.pipeline_mode<synchronous>, transform_indices = @transform_5, window_bounds = array<i64: 128, 128>}, {pipeline_mode = #tpu.pipeline_mode<synchronous>, transform_indices = @transform_6, window_bounds = array<i64: 1, 128>}, {pipeline_mode = #tpu.pipeline_mode<synchronous>, transform_indices = @transform_7, window_bounds = array<i64: 128, 8>}, {pipeline_mode = #tpu.pipeline_mode<synchronous>, transform_indices = @transform_8, window_bounds = array<i64: 1, 8>}, {transform_indices = @transform_9, window_bounds = array<i64: 8, 8>}]} {
    %c0 = arith.constant 0 : index
    %c0_0 = arith.constant 0 : index
    %0 = vector.load %arg1[%c0, %c0_0] : memref<8x16xf32, #tpu.memory_space<vmem>>, vector<8x16xf32>
    %1 = arith.truncf %0 : vector<8x16xf32> to vector<8x16xbf16>
    %c0_1 = arith.constant 0 : index
    %c0_2 = arith.constant 0 : index
    %2 = vector.load %arg2[%c0_1, %c0_2] : memref<16x128xbf16, #tpu.memory_space<vmem>>, vector<16x128xbf16>
    %cst = arith.constant dense<0.000000e+00> : vector<8x128xf32>
    %3 = tpu.matmul %1, %2, %cst {dimension_numbers = #tpu.dot_dimension_numbers<[1], [0], [0], [1], [0, 0, 1, 1], [], []>} : vector<8x16xbf16>, vector<16x128xbf16>, vector<8x128xf32> -> vector<8x128xf32>
    %c0_3 = arith.constant 0 : index
    %c0_4 = arith.constant 0 : index
    %4 = vector.load %arg3[%c0_3, %c0_4] : memref<1x128xf32, #tpu.memory_space<vmem>>, vector<1x128xf32>
    %5 = vector.broadcast %4 : vector<1x128xf32> to vector<8x128xf32>
    %6 = arith.addf %3, %5 : vector<8x128xf32>
    %7 = math.tanh %6 : vector<8x128xf32>
    %8 = arith.truncf %7 : vector<8x128xf32> to vector<8x128xbf16>
    %c0_5 = arith.constant 0 : index
    %c0_6 = arith.constant 0 : index
    %9 = vector.load %arg4[%c0_5, %c0_6] : memref<128x128xbf16, #tpu.memory_space<vmem>>, vector<128x128xbf16>
    %cst_7 = arith.constant dense<0.000000e+00> : vector<8x128xf32>
    %10 = tpu.matmul %8, %9, %cst_7 {dimension_numbers = #tpu.dot_dimension_numbers<[1], [0], [0], [1], [0, 0, 1, 1], [], []>} : vector<8x128xbf16>, vector<128x128xbf16>, vector<8x128xf32> -> vector<8x128xf32>
    %c0_8 = arith.constant 0 : index
    %c0_9 = arith.constant 0 : index
    %11 = vector.load %arg5[%c0_8, %c0_9] : memref<1x128xf32, #tpu.memory_space<vmem>>, vector<1x128xf32>
    %12 = vector.broadcast %11 : vector<1x128xf32> to vector<8x128xf32>
    %13 = arith.addf %10, %12 : vector<8x128xf32>
    %14 = math.tanh %13 : vector<8x128xf32>
    %15 = arith.truncf %14 : vector<8x128xf32> to vector<8x128xbf16>
    %c0_10 = arith.constant 0 : index
    %c0_11 = arith.constant 0 : index
    %16 = vector.load %arg6[%c0_10, %c0_11] : memref<128x128xbf16, #tpu.memory_space<vmem>>, vector<128x128xbf16>
    %cst_12 = arith.constant dense<0.000000e+00> : vector<8x128xf32>
    %17 = tpu.matmul %15, %16, %cst_12 {dimension_numbers = #tpu.dot_dimension_numbers<[1], [0], [0], [1], [0, 0, 1, 1], [], []>} : vector<8x128xbf16>, vector<128x128xbf16>, vector<8x128xf32> -> vector<8x128xf32>
    %c0_13 = arith.constant 0 : index
    %c0_14 = arith.constant 0 : index
    %18 = vector.load %arg7[%c0_13, %c0_14] : memref<1x128xf32, #tpu.memory_space<vmem>>, vector<1x128xf32>
    %19 = vector.broadcast %18 : vector<1x128xf32> to vector<8x128xf32>
    %20 = arith.addf %17, %19 : vector<8x128xf32>
    %21 = math.tanh %20 : vector<8x128xf32>
    %22 = arith.truncf %21 : vector<8x128xf32> to vector<8x128xbf16>
    %c0_15 = arith.constant 0 : index
    %c0_16 = arith.constant 0 : index
    %23 = vector.load %arg8[%c0_15, %c0_16] : memref<128x8xbf16, #tpu.memory_space<vmem>>, vector<128x8xbf16>
    %cst_17 = arith.constant dense<0.000000e+00> : vector<8x8xf32>
    %24 = tpu.matmul %22, %23, %cst_17 {dimension_numbers = #tpu.dot_dimension_numbers<[1], [0], [0], [1], [0, 0, 1, 1], [], []>} : vector<8x128xbf16>, vector<128x8xbf16>, vector<8x8xf32> -> vector<8x8xf32>
    %c0_18 = arith.constant 0 : index
    %c0_19 = arith.constant 0 : index
    %25 = vector.load %arg9[%c0_18, %c0_19] : memref<1x8xf32, #tpu.memory_space<vmem>>, vector<1x8xf32>
    %26 = vector.broadcast %25 : vector<1x8xf32> to vector<8x8xf32>
    %27 = arith.addf %24, %26 : vector<8x8xf32>
    %c0_20 = arith.constant 0 : index
    %c0_21 = arith.constant 0 : index
    %28 = vector.load %arg10[%c0_20, %c0_21] : memref<8x8xf32, #tpu.memory_space<vmem>>, vector<8x8xf32>
    tpu.vector_store %arg10[%c0_20, %c0_21], %27 {strides = array<i32>} : memref<8x8xf32, #tpu.memory_space<vmem>>, vector<8x8xf32>,
    return
  }
  func.func @transform_0(%arg0: i32) -> (i32, i32) {
    %c0_i32 = arith.constant 0 : i32
    %c0_i32_0 = arith.constant 0 : i32
    return %arg0, %c0_i32 : i32, i32
  }
  func.func @transform_1(%arg0: i32) -> (i32, i32) {
    %c0_i32 = arith.constant 0 : i32
    %c0_i32_0 = arith.constant 0 : i32
    %c0_i32_1 = arith.constant 0 : i32
    return %c0_i32, %c0_i32_0 : i32, i32
  }
  func.func @transform_2(%arg0: i32) -> (i32, i32) {
    %c0_i32 = arith.constant 0 : i32
    %c0_i32_0 = arith.constant 0 : i32
    %c0_i32_1 = arith.constant 0 : i32
    return %c0_i32, %c0_i32_0 : i32, i32
  }
  func.func @transform_3(%arg0: i32) -> (i32, i32) {
    %c0_i32 = arith.constant 0 : i32
    %c0_i32_0 = arith.constant 0 : i32
    %c0_i32_1 = arith.constant 0 : i32
    return %c0_i32, %c0_i32_0 : i32, i32
  }
  func.func @transform_4(%arg0: i32) -> (i32, i32) {
    %c0_i32 = arith.constant 0 : i32
    %c0_i32_0 = arith.constant 0 : i32
    %c0_i32_1 = arith.constant 0 : i32
    return %c0_i32, %c0_i32_0 : i32, i32
  }
  func.func @transform_5(%arg0: i32) -> (i32, i32) {
    %c0_i32 = arith.constant 0 : i32
    %c0_i32_0 = arith.constant 0 : i32
    %c0_i32_1 = arith.constant 0 : i32
    return %c0_i32, %c0_i32_0 : i32, i32
  }
  func.func @transform_6(%arg0: i32) -> (i32, i32) {
    %c0_i32 = arith.constant 0 : i32
    %c0_i32_0 = arith.constant 0 : i32
    %c0_i32_1 = arith.constant 0 : i32
    return %c0_i32, %c0_i32_0 : i32, i32
  }
  func.func @transform_7(%arg0: i32) -> (i32, i32) {
    %c0_i32 = arith.constant 0 : i32
    %c0_i32_0 = arith.constant 0 : i32
    %c0_i32_1 = arith.constant 0 : i32
    return %c0_i32, %c0_i32_0 : i32, i32
  }
  func.func @transform_8(%arg0: i32) -> (i32, i32) {
    %c0_i32 = arith.constant 0 : i32
    %c0_i32_0 = arith.constant 0 : i32
    %c0_i32_1 = arith.constant 0 : i32
    return %c0_i32, %c0_i32_0 : i32, i32
  }
  func.func @transform_9(%arg0: i32) -> (i32, i32) {
    %c0_i32 = arith.constant 0 : i32
    %c0_i32_0 = arith.constant 0 : i32
    return %arg0, %c0_i32 : i32, i32
  }
}

</mosaic_0001>

<llo_original>
// kernel: mlp_forward.1
$region0: #{mlp_forward.1}
  #allocation0 [shape = 'u32[]', space=smem, size = 0x4, offset = 0x4, fixed_abs, tag = 'smem constant byte address 0x4 - core index']
  #allocation1 [shape = 'u32[144,128]{1,0:T(1,128)}', space=vmem, size = 0x12000, scoped, tag = 'internal scratch']
  %s0 = inlined_call_operand.vmem [shape: f32[8,16], index: 0, kind: input, shape index: {}]
  %s1 = inlined_call_operand.hbm [shape: bf16[16,128], index: 1, kind: input, shape index: {}]
  %s2 = inlined_call_operand.vmem [shape: f32[1,128], index: 2, kind: input, shape index: {}]
  %s3 = inlined_call_operand.vmem [shape: bf16[128,128], index: 3, kind: input, shape index: {}]
  %s4 = inlined_call_operand.vmem [shape: f32[1,128], index: 4, kind: input, shape index: {}]
  %s5 = inlined_call_operand.hbm [shape: bf16[128,128], index: 5, kind: input, shape index: {}]
  %s6 = inlined_call_operand.vmem [shape: f32[1,128], index: 6, kind: input, shape index: {}]
  %s7 = inlined_call_operand.vmem [shape: bf16[128,8], index: 7, kind: input, shape index: {}]
  %s8 = inlined_call_operand.vmem [shape: f32[1,8], index: 8, kind: input, shape index: {}]
  %s9 = inlined_call_operand.hbm [shape: f32[8,8], index: 9, kind: output, shape index: {}]
  %s10 = sld [smem:[#allocation0]]
  $region54: #{mlp_forward.1} parent=0
    _
  %s12 = ssub.s32 1, %s10
  %s13 = scalar_select 0, %s12, %s10
  $region1: #{mlp_forward.1} parent=0
    #allocation2 [shape = 'u8[4096]{0}', space=vmem, size = 0x1000, scoped, tag = 'input window, operand 1, single buffered']
    #allocation3 [shape = 's32[1]{0}', space=sflag, size = 0x4, scoped, tag = 'scoped memory for mlp_forward.1']
    #allocation4 [shape = 's32[1]{0}', space=sflag, size = 0x4, scoped, tag = 'scoped memory for mlp_forward.1']
    #allocation5 [shape = 'u8[32768]{0}', space=vmem, size = 0x8000, scoped, tag = 'input window, operand 5, single buffered']
    #allocation6 [shape = 's32[1]{0}', space=sflag, size = 0x4, scoped, tag = 'scoped memory for mlp_forward.1']
    #allocation7 [shape = 'u8[4096]{0}', space=vmem, size = 0x1000, scoped, tag = 'output window, operand 0, single buffered']
    %14 = vsyncpa [#allocation3], 0
    %15 = vsyncpa [#allocation6], 0
    %16 = vsyncpa [#allocation4], 0
    // Predicated region
    $region2: #{mlp_forward.1} parent=1 // pred_check
      _
    $region3: #{mlp_forward.1} parent=1 // pred_check_branch
      %18 = sbr.rel (0) target = $region5
    $region4: #{mlp_forward.1} parent=1 // pred_region
      _
    $region5: #{mlp_forward.1} parent=1 // pred_fallthru
      _
    // Predicated region
    $region6: #{mlp_forward.1} parent=1 // pred_check
      _
    $region7: #{mlp_forward.1} parent=1 // pred_check_branch
      %20 = sbr.rel (0) target = $region9
    $region8: #{mlp_forward.1} parent=1 // pred_region
      %s22 = ssub.s32 128, 128
      %23 = vsyncadd [#allocation3], %s22
      %s24 = sshll.u32 [#allocation2], 4
      %s25 = int_to_ptr.vmem [resolvable:$true] %s24
      %30 = dma.hbm_to_vmem [thread:$0]  %s1, 128, %s25, [#allocation3], 64, 64, 4
    $region9: #{mlp_forward.1} parent=1 // pred_fallthru
      _
    // Predicated region
    $region10: #{mlp_forward.1} parent=1 // pred_check
      _
    $region11: #{mlp_forward.1} parent=1 // pred_check_branch
      %32 = sbr.rel (0) target = $region13
    $region12: #{mlp_forward.1} parent=1 // pred_region
      _
    $region13: #{mlp_forward.1} parent=1 // pred_fallthru
      _
    // Predicated region
    $region14: #{mlp_forward.1} parent=1 // pred_check
      _
    $region15: #{mlp_forward.1} parent=1 // pred_check_branch
      %34 = sbr.rel (0) target = $region17
    $region16: #{mlp_forward.1} parent=1 // pred_region
      _
    $region17: #{mlp_forward.1} parent=1 // pred_fallthru
      _
    // Predicated region
    $region18: #{mlp_forward.1} parent=1 // pred_check
      _
    $region19: #{mlp_forward.1} parent=1 // pred_check_branch
      %36 = sbr.rel (0) target = $region21
    $region20: #{mlp_forward.1} parent=1 // pred_region
      _
    $region21: #{mlp_forward.1} parent=1 // pred_fallthru
      _
    // Predicated region
    $region22: #{mlp_forward.1} parent=1 // pred_check
      _
    $region23: #{mlp_forward.1} parent=1 // pred_check_branch
      %38 = sbr.rel (0) target = $region25
    $region24: #{mlp_forward.1} parent=1 // pred_region
      %s40 = ssub.s32 1024, 1024
      %41 = vsyncadd [#allocation6], %s40
      %s42 = sshll.u32 [#allocation5], 4
      %s43 = int_to_ptr.vmem [resolvable:$true] %s42
      %48 = dma.hbm_to_vmem [thread:$0]  %s5, 1024, %s43, [#allocation6], 64, 64, 4
    $region25: #{mlp_forward.1} parent=1 // pred_fallthru
      _
    // Predicated region
    $region26: #{mlp_forward.1} parent=1 // pred_check
      _
    $region27: #{mlp_forward.1} parent=1 // pred_check_branch
      %50 = sbr.rel (0) target = $region29
    $region28: #{mlp_forward.1} parent=1 // pred_region
      _
    $region29: #{mlp_forward.1} parent=1 // pred_fallthru
      _
    // Predicated region
    $region30: #{mlp_forward.1} parent=1 // pred_check
      _
    $region31: #{mlp_forward.1} parent=1 // pred_check_branch
      %52 = sbr.rel (0) target = $region33
    $region32: #{mlp_forward.1} parent=1 // pred_region
      _
    $region33: #{mlp_forward.1} parent=1 // pred_fallthru
      _
    // Predicated region
    $region34: #{mlp_forward.1} parent=1 // pred_check
      _
    $region35: #{mlp_forward.1} parent=1 // pred_check_branch
      %54 = sbr.rel (0) target = $region37
    $region36: #{mlp_forward.1} parent=1 // pred_region
      _
    $region37: #{mlp_forward.1} parent=1 // pred_fallthru
      _
    // Predicated region
    $region38: #{mlp_forward.1} parent=1 // pred_check
      _
    $region39: #{mlp_forward.1} parent=1 // pred_check_branch
      %56 = sbr.rel (0) target = $region41
    $region40: #{mlp_forward.1} parent=1 // pred_region
      %57 = dma.done [#allocation3], 128
    $region41: #{mlp_forward.1} parent=1 // pred_fallthru
      _
    // Predicated region
    $region42: #{mlp_forward.1} parent=1 // pred_check
      _
    $region43: #{mlp_forward.1} parent=1 // pred_check_branch
      %59 = sbr.rel (0) target = $region45
    $region44: #{mlp_forward.1} parent=1 // pred_region
      %60 = dma.done [#allocation6], 1024
    $region45: #{mlp_forward.1} parent=1 // pred_fallthru
      _
    %v62 = vld [vmem:[%s0] sm:$0xff]
    %v63 = vpack.c.bf16 %v62, %v62
    %v64 = vld [vmem:[#allocation2] sm:$0xf]
    %v65 = vld [vmem:[#allocation2 + $0x4] sm:$0xf]
    %v66 = vld [vmem:[%s2] sm:$0x1]
    %v68 = vlaneseq
    %v69 = vshrl.u32 %v68, 7
    %v70 = vsub.s32 0, %v69
    %v71 = vrot.slane %v66, %v70
    %v75 = vunpack.c.l.b16 %v64
    %v76 = vunpack.c.l.b16 %v65
    %v77 = vpack.c.b16 %v76, %v75
    %vm79 = vcmask 130048
    %v81 = vsel %vm79, %v63, 0
    %83 = vmatprep.subr.bf16.mxu0 0
    %84 = vmatpush1.bf16.msra.mxu0 %v77
    %85 = vmatprep.subr.bf16.mxu0 0
    %86 = vmatpush1.bf16.msra.mxu0 0
    %87 = vmatprep.subr.bf16.mxu0 0
    %88 = vmatpush1.bf16.msra.mxu0 0
    %89 = vmatprep.subr.bf16.mxu0 0
    %90 = vmatpush1.bf16.msra.mxu0 0
    %91 = vmatprep.subr.bf16.mxu0 0
    %92 = vmatpush1.bf16.msra.mxu0 0
    %93 = vmatprep.subr.bf16.mxu0 0
    %94 = vmatpush1.bf16.msra.mxu0 0
    %95 = vmatprep.subr.bf16.mxu0 0
    %96 = vmatpush1.bf16.msra.mxu0 0
    %97 = vmatprep.subr.bf16.mxu0 0
    %98 = vmatpush1.bf16.msra.mxu0 0
    %99 = vmatprep.subr.bf16.mxu0 0
    %100 = vmatpush1.bf16.msra.mxu0 0
    %101 = vmatprep.subr.bf16.mxu0 0
    %102 = vmatpush1.bf16.msra.mxu0 0
    %103 = vmatprep.subr.bf16.mxu0 0
    %104 = vmatpush1.bf16.msra.mxu0 0
    %105 = vmatprep.subr.bf16.mxu0 0
    %106 = vmatpush1.bf16.msra.mxu0 0
    %107 = vmatprep.subr.bf16.mxu0 0
    %108 = vmatpush1.bf16.msra.mxu0 0
    %109 = vmatprep.subr.bf16.mxu0 0
    %110 = vmatpush1.bf16.msra.mxu0 0
    %111 = vmatprep.subr.bf16.mxu0 0
    %112 = vmatpush1.bf16.msra.mxu0 0
    %113 = vmatprep.subr.bf16.mxu0 0
    %114 = vmatpush1.bf16.msra.mxu0 0
    %115 = vmatprep.mubr.bf16.mxu0 0
    %116 = vmatmul.mubr.bf16.gmra.mrb[0].mxu0 %v81
    %v117 = vpop.f32.mrb[0].mxu0
    %v118 = vadd.f32 %v71, %v117
    %v119 = vpop.f32.mrb[0].mxu0
    %v120 = vpop.f32.mrb[0].mxu0
    %v121 = vpop.f32.mrb[0].mxu0
    %122 = vdwg.mxu0
    %v123 = vtanh.pop %v118
    %v124 = vpack.c.bf16 %v123, %v123
    %v125 = vld [vmem:[%s3] sm:$0xf]
    %v126 = vld [vmem:[%s3 + $0x4] sm:$0xf]
    %v127 = vld [vmem:[%s3 + $0x8] sm:$0xf]
    %v128 = vld [vmem:[%s3 + $0xc] sm:$0xf]
    %v129 = vld [vmem:[%s3 + $0x10] sm:$0xf]
    %v130 = vld [vmem:[%s3 + $0x14] sm:$0xf]
    %v131 = vld [vmem:[%s3 + $0x18] sm:$0xf]
    %v132 = vld [vmem:[%s3 + $0x1c] sm:$0xf]
    %v133 = vld [vmem:[%s3 + $0x20] sm:$0xf]
    %v134 = vld [vmem:[%s3 + $0x24] sm:$0xf]
    %v135 = vld [vmem:[%s3 + $0x28] sm:$0xf]
    %v136 = vld [vmem:[%s3 + $0x2c] sm:$0xf]
    %v137 = vld [vmem:[%s3 + $0x30] sm:$0xf]
    %v138 = vld [vmem:[%s3 + $0x34] sm:$0xf]
    %v139 = vld [vmem:[%s3 + $0x38] sm:$0xf]
    %v140 = vld [vmem:[%s3 + $0x3c] sm:$0xf]
    %v141 = vld [vmem:[%s4] sm:$0x1]
    %v143 = vlaneseq
    %v144 = vshrl.u32 %v143, 7
    %v145 = vsub.s32 0, %v144
    %v146 = vrot.slane %v141, %v145
    %v164 = vunpack.c.l.b16 %v125
    %v165 = vunpack.c.l.b16 %v126
    %v166 = vunpack.c.l.b16 %v127
    %v167 = vunpack.c.l.b16 %v128
    %v168 = vunpack.c.l.b16 %v129
    %v169 = vunpack.c.l.b16 %v130
    %v170 = vunpack.c.l.b16 %v131
    %v171 = vunpack.c.l.b16 %v132
    %v172 = vunpack.c.l.b16 %v133
    %v173 = vunpack.c.l.b16 %v134
    %v174 = vunpack.c.l.b16 %v135
    %v175 = vunpack.c.l.b16 %v136
    %v176 = vunpack.c.l.b16 %v137
    %v177 = vunpack.c.l.b16 %v138
    %v178 = vunpack.c.l.b16 %v139
    %v179 = vunpack.c.l.b16 %v140
    %v180 = vpack.c.b16 %v165, %v164
    %v181 = vpack.c.b16 %v167, %v166
    %v182 = vpack.c.b16 %v169, %v168
    %v183 = vpack.c.b16 %v171, %v170
    %v184 = vpack.c.b16 %v173, %v172
    %v185 = vpack.c.b16 %v175, %v174
    %v186 = vpack.c.b16 %v177, %v176
    %v187 = vpack.c.b16 %v179, %v178
    %196 = vmatprep.subr.bf16.mxu0 0
    %197 = vmatpush1.bf16.msra.mxu0 %v180
    %198 = vmatprep.subr.bf16.mxu0 0
    %199 = vmatpush1.bf16.msra.mxu0 %v181
    %200 = vmatprep.subr.bf16.mxu0 0
    %201 = vmatpush1.bf16.msra.mxu0 %v182
    %202 = vmatprep.subr.bf16.mxu0 0
    %203 = vmatpush1.bf16.msra.mxu0 %v183
    %204 = vmatprep.subr.bf16.mxu0 0
    %205 = vmatpush1.bf16.msra.mxu0 %v184
    %206 = vmatprep.subr.bf16.mxu0 0
    %207 = vmatpush1.bf16.msra.mxu0 %v185
    %208 = vmatprep.subr.bf16.mxu0 0
    %209 = vmatpush1.bf16.msra.mxu0 %v186
    %210 = vmatprep.subr.bf16.mxu0 0
    %211 = vmatpush1.bf16.msra.mxu0 %v187
    %212 = vmatprep.subr.bf16.mxu0 0
    %213 = vmatpush1.bf16.msra.mxu0 0
    %214 = vmatprep.subr.bf16.mxu0 0
    %215 = vmatpush1.bf16.msra.mxu0 0
    %216 = vmatprep.subr.bf16.mxu0 0
    %217 = vmatpush1.bf16.msra.mxu0 0
    %218 = vmatprep.subr.bf16.mxu0 0
    %219 = vmatpush1.bf16.msra.mxu0 0
    %220 = vmatprep.subr.bf16.mxu0 0
    %221 = vmatpush1.bf16.msra.mxu0 0
    %222 = vmatprep.subr.bf16.mxu0 0
    %223 = vmatpush1.bf16.msra.mxu0 0
    %224 = vmatprep.subr.bf16.mxu0 0
    %225 = vmatpush1.bf16.msra.mxu0 0
    %226 = vmatprep.subr.bf16.mxu0 0
    %227 = vmatpush1.bf16.msra.mxu0 0
    %228 = vmatprep.mubr.bf16.mxu0 0
    %229 = vmatmul.mubr.bf16.gmra.mrb[0].mxu0 %v124
    %v230 = vpop.f32.mrb[0].mxu0
    %v231 = vadd.f32 %v146, %v230
    %v232 = vpop.f32.mrb[0].mxu0
    %v233 = vpop.f32.mrb[0].mxu0
    %v234 = vpop.f32.mrb[0].mxu0
    %235 = vdwg.mxu0
    %v236 = vtanh.pop %v231
    %v237 = vpack.c.bf16 %v236, %v236
    %v238 = vld [vmem:[#allocation5] sm:$0xf]
    %v239 = vld [vmem:[#allocation5 + $0x4] sm:$0xf]
    %v240 = vld [vmem:[#allocation5 + $0x8] sm:$0xf]
    %v241 = vld [vmem:[#allocation5 + $0xc] sm:$0xf]
    %v242 = vld [vmem:[#allocation5 + $0x10] sm:$0xf]
    %v243 = vld [vmem:[#allocation5 + $0x14] sm:$0xf]
    %v244 = vld [vmem:[#allocation5 + $0x18] sm:$0xf]
    %v245 = vld [vmem:[#allocation5 + $0x1c] sm:$0xf]
    %v246 = vld [vmem:[#allocation5 + $0x20] sm:$0xf]
    %v247 = vld [vmem:[#allocation5 + $0x24] sm:$0xf]
    %v248 = vld [vmem:[#allocation5 + $0x28] sm:$0xf]
    %v249 = vld [vmem:[#allocation5 + $0x2c] sm:$0xf]
    %v250 = vld [vmem:[#allocation5 + $0x30] sm:$0xf]
    %v251 = vld [vmem:[#allocation5 + $0x34] sm:$0xf]
    %v252 = vld [vmem:[#allocation5 + $0x38] sm:$0xf]
    %v253 = vld [vmem:[#allocation5 + $0x3c] sm:$0xf]
    %v254 = vld [vmem:[%s6] sm:$0x1]
    %v256 = vlaneseq
    %v257 = vshrl.u32 %v256, 7
    %v258 = vsub.s32 0, %v257
    %v259 = vrot.slane %v254, %v258
    %v277 = vunpack.c.l.b16 %v238
    %v278 = vunpack.c.l.b16 %v239
    %v279 = vunpack.c.l.b16 %v240
    %v280 = vunpack.c.l.b16 %v241
    %v281 = vunpack.c.l.b16 %v242
    %v282 = vunpack.c.l.b16 %v243
    %v283 = vunpack.c.l.b16 %v244
    %v284 = vunpack.c.l.b16 %v245
    %v285 = vunpack.c.l.b16 %v246
    %v286 = vunpack.c.l.b16 %v247
    %v287 = vunpack.c.l.b16 %v248
    %v288 = vunpack.c.l.b16 %v249
    %v289 = vunpack.c.l.b16 %v250
    %v290 = vunpack.c.l.b16 %v251
    %v291 = vunpack.c.l.b16 %v252
    %v292 = vunpack.c.l.b16 %v253
    %v293 = vpack.c.b16 %v278, %v277
    %v294 = vpack.c.b16 %v280, %v279
    %v295 = vpack.c.b16 %v282, %v281
    %v296 = vpack.c.b16 %v284, %v283
    %v297 = vpack.c.b16 %v286, %v285
    %v298 = vpack.c.b16 %v288, %v287
    %v299 = vpack.c.b16 %v290, %v289
    %v300 = vpack.c.b16 %v292, %v291
    %309 = vmatprep.subr.bf16.mxu0 0
    %310 = vmatpush1.bf16.msra.mxu0 %v293
    %311 = vmatprep.subr.bf16.mxu0 0
    %312 = vmatpush1.bf16.msra.mxu0 %v294
    %313 = vmatprep.subr.bf16.mxu0 0
    %314 = vmatpush1.bf16.msra.mxu0 %v295
    %315 = vmatprep.subr.bf16.mxu0 0
    %316 = vmatpush1.bf16.msra.mxu0 %v296
    %317 = vmatprep.subr.bf16.mxu0 0
    %318 = vmatpush1.bf16.msra.mxu0 %v297
    %319 = vmatprep.subr.bf16.mxu0 0
    %320 = vmatpush1.bf16.msra.mxu0 %v298
    %321 = vmatprep.subr.bf16.mxu0 0
    %322 = vmatpush1.bf16.msra.mxu0 %v299
    %323 = vmatprep.subr.bf16.mxu0 0
    %324 = vmatpush1.bf16.msra.mxu0 %v300
    %325 = vmatprep.subr.bf16.mxu0 0
    %326 = vmatpush1.bf16.msra.mxu0 0
    %327 = vmatprep.subr.bf16.mxu0 0
    %328 = vmatpush1.bf16.msra.mxu0 0
    %329 = vmatprep.subr.bf16.mxu0 0
    %330 = vmatpush1.bf16.msra.mxu0 0
    %331 = vmatprep.subr.bf16.mxu0 0
    %332 = vmatpush1.bf16.msra.mxu0 0
    %333 = vmatprep.subr.bf16.mxu0 0
    %334 = vmatpush1.bf16.msra.mxu0 0
    %335 = vmatprep.subr.bf16.mxu0 0
    %336 = vmatpush1.bf16.msra.mxu0 0
    %337 = vmatprep.subr.bf16.mxu0 0
    %338 = vmatpush1.bf16.msra.mxu0 0
    %339 = vmatprep.subr.bf16.mxu0 0
    %340 = vmatpush1.bf16.msra.mxu0 0
    %341 = vmatprep.mubr.bf16.mxu0 0
    %342 = vmatmul.mubr.bf16.gmra.mrb[0].mxu0 %v237
    %v343 = vpop.f32.mrb[0].mxu0
    %v344 = vadd.f32 %v259, %v343
    %v345 = vpop.f32.mrb[0].mxu0
    %v346 = vpop.f32.mrb[0].mxu0
    %v347 = vpop.f32.mrb[0].mxu0
    %348 = vdwg.mxu0
    %v349 = vtanh.pop %v344
    %v350 = vpack.c.bf16 %v349, %v349
    %v351 = vld [vmem:[%s7] sm:$0xf]
    %v352 = vld [vmem:[%s7 + $0x4] sm:$0xf]
    %v353 = vld [vmem:[%s7 + $0x8] sm:$0xf]
    %v354 = vld [vmem:[%s7 + $0xc] sm:$0xf]
    %v355 = vld [vmem:[%s7 + $0x10] sm:$0xf]
    %v356 = vld [vmem:[%s7 + $0x14] sm:$0xf]
    %v357 = vld [vmem:[%s7 + $0x18] sm:$0xf]
    %v358 = vld [vmem:[%s7 + $0x1c] sm:$0xf]
    %v359 = vld [vmem:[%s7 + $0x20] sm:$0xf]
    %v360 = vld [vmem:[%s7 + $0x24] sm:$0xf]
    %v361 = vld [vmem:[%s7 + $0x28] sm:$0xf]
    %v362 = vld [vmem:[%s7 + $0x2c] sm:$0xf]
    %v363 = vld [vmem:[%s7 + $0x30] sm:$0xf]
    %v364 = vld [vmem:[%s7 + $0x34] sm:$0xf]
    %v365 = vld [vmem:[%s7 + $0x38] sm:$0xf]
    %v366 = vld [vmem:[%s7 + $0x3c] sm:$0xf]
    %v367 = vld [vmem:[%s8] sm:$0x1]
    %v369 = vlaneseq
    %v370 = vshrl.u32 %v369, 7
    %v371 = vsub.s32 0, %v370
    %v372 = vrot.slane %v367, %v371
    %v390 = vunpack.c.l.b16 %v351
    %v391 = vunpack.c.l.b16 %v352
    %v392 = vunpack.c.l.b16 %v353
    %v393 = vunpack.c.l.b16 %v354
    %v394 = vunpack.c.l.b16 %v355
    %v395 = vunpack.c.l.b16 %v356
    %v396 = vunpack.c.l.b16 %v357
    %v397 = vunpack.c.l.b16 %v358
    %v398 = vunpack.c.l.b16 %v359
    %v399 = vunpack.c.l.b16 %v360
    %v400 = vunpack.c.l.b16 %v361
    %v401 = vunpack.c.l.b16 %v362
    %v402 = vunpack.c.l.b16 %v363
    %v403 = vunpack.c.l.b16 %v364
    %v404 = vunpack.c.l.b16 %v365
    %v405 = vunpack.c.l.b16 %v366
    %v406 = vpack.c.b16 %v391, %v390
    %v407 = vpack.c.b16 %v393, %v392
    %v408 = vpack.c.b16 %v395, %v394
    %v409 = vpack.c.b16 %v397, %v396
    %v410 = vpack.c.b16 %v399, %v398
    %v411 = vpack.c.b16 %v401, %v400
    %v412 = vpack.c.b16 %v403, %v402
    %v413 = vpack.c.b16 %v405, %v404
    %422 = vmatprep.subr.bf16.mxu0 0
    %423 = vmatpush1.bf16.msra.mxu0 %v406
    %424 = vmatprep.subr.bf16.mxu0 0
    %425 = vmatpush1.bf16.msra.mxu0 %v407
    %426 = vmatprep.subr.bf16.mxu0 0
    %427 = vmatpush1.bf16.msra.mxu0 %v408
    %428 = vmatprep.subr.bf16.mxu0 0
    %429 = vmatpush1.bf16.msra.mxu0 %v409
    %430 = vmatprep.subr.bf16.mxu0 0
    %431 = vmatpush1.bf16.msra.mxu0 %v410
    %432 = vmatprep.subr.bf16.mxu0 0
    %433 = vmatpush1.bf16.msra.mxu0 %v411
    %434 = vmatprep.subr.bf16.mxu0 0
    %435 = vmatpush1.bf16.msra.mxu0 %v412
    %436 = vmatprep.subr.bf16.mxu0 0
    %437 = vmatpush1.bf16.msra.mxu0 %v413
    %438 = vmatprep.subr.bf16.mxu0 0
    %439 = vmatpush1.bf16.msra.mxu0 0
    %440 = vmatprep.subr.bf16.mxu0 0
    %441 = vmatpush1.bf16.msra.mxu0 0
    %442 = vmatprep.subr.bf16.mxu0 0
    %443 = vmatpush1.bf16.msra.mxu0 0
    %444 = vmatprep.subr.bf16.mxu0 0
    %445 = vmatpush1.bf16.msra.mxu0 0
    %446 = vmatprep.subr.bf16.mxu0 0
    %447 = vmatpush1.bf16.msra.mxu0 0
    %448 = vmatprep.subr.bf16.mxu0 0
    %449 = vmatpush1.bf16.msra.mxu0 0
    %450 = vmatprep.subr.bf16.mxu0 0
    %451 = vmatpush1.bf16.msra.mxu0 0
    %452 = vmatprep.subr.bf16.mxu0 0
    %453 = vmatpush1.bf16.msra.mxu0 0
    %454 = vmatprep.mubr.bf16.mxu0 0
    %455 = vmatmul.mubr.bf16.gmra.mrb[0].mxu0 %v350
    %v456 = vpop.f32.mrb[0].mxu0
    %v457 = vadd.f32 %v372, %v456
    %v458 = vpop.f32.mrb[0].mxu0
    %v459 = vpop.f32.mrb[0].mxu0
    %v460 = vpop.f32.mrb[0].mxu0
    %461 = vdwg.mxu0
    %vm462 = vcmask 64512
    %463 = vst.msk [vmem:[#allocation7] sm:$0xff] %vm462, %v457
    // Predicated region
    $region46: #{mlp_forward.1} parent=1 // pred_check
      _
    $region47: #{mlp_forward.1} parent=1 // pred_check_branch
      %465 = sbr.rel (0) target = $region49
    $region48: #{mlp_forward.1} parent=1 // pred_region
      %s467 = ssub.s32 128, 128
      %468 = vsyncadd [#allocation4], %s467
      %s470 = sshll.u32 [#allocation7], 4
      %s471 = int_to_ptr.vmem [resolvable:$true] %s470
      %473 = dma.vmem_to_hbm [thread:$0]  %s471, 128, %s9, [#allocation4]
    $region49: #{mlp_forward.1} parent=1 // pred_fallthru
      _
    // Predicated region
    $region50: #{mlp_forward.1} parent=1 // pred_check
      _
    $region51: #{mlp_forward.1} parent=1 // pred_check_branch
      %475 = sbr.rel (0) target = $region53
    $region52: #{mlp_forward.1} parent=1 // pred_region
      %476 = dma.done [#allocation4], 128
    $region53: #{mlp_forward.1} parent=1 // pred_fallthru
      _
    %477 = vsyncpa [#allocation3], 1
    %478 = vsyncpa [#allocation6], 1
    %479 = vsyncpa [#allocation4], 1

</llo_original>
